<compile_context>
chip_gen: v7x
topology: tpu7x:2x2x1
jax: 0.10.0
libtpu: 0.0.40
codegen_flags: <defaults>
</compile_context>

<pallas_src>
import functools

import jax
import jax.numpy as jnp
from jax.experimental import pallas as pl
from jax.experimental.pallas import tpu as pltpu


def _round_up(n, m):
    return ((n + m - 1) // m) * m


# ----------------------------------------------------------------------------
# One-time parameter packing (hoisted out of the per-call path).
# Packed layout of the combined slab: [ h | x | zeros ] along the lane axis.
# ----------------------------------------------------------------------------
def prepare_params(i2h_w, i2h_b, h2o_w, h2o_b, obs_dim):
    """Pad + transpose + pack the weights once.  Returns (w1T, b1, w2T, b2)."""
    nhidden = i2h_w.shape[0]
    out_dim = h2o_w.shape[0]
    comb = obs_dim + nhidden
    FCH = _round_up(comb, 128)          # lane width of the packed input slab
    FH = _round_up(nhidden, 128)        # lane width of the hidden state
    FOUT = _round_up(out_dim, 128)      # lane width of the output
    f32 = jnp.float32

    wh_t = i2h_w[:, obs_dim:].T.astype(f32)   # (nhidden, nhidden) -> h part
    wx_t = i2h_w[:, :obs_dim].T.astype(f32)   # (obs_dim, nhidden) -> x part

    # Packed i2h weight: rows [0:nhidden] multiply h, rows [nhidden:comb]
    # multiply x, matching the [h | x] slab layout.
    w1T = (jnp.zeros((FCH, FH), f32)
           .at[:nhidden, :nhidden].set(wh_t)
           .at[nhidden:comb, :nhidden].set(wx_t))
    b1 = jnp.zeros((1, FH), f32).at[0, :nhidden].set(i2h_b.astype(f32))
    w2T = jnp.zeros((FH, FOUT), f32).at[:nhidden, :out_dim].set(
        h2o_w.T.astype(f32))
    b2 = jnp.zeros((1, FOUT), f32).at[0, :out_dim].set(h2o_b.astype(f32))
    return w1T, b1, w2T, b2


# ----------------------------------------------------------------------------
# Single-step kernel (matches nn.Module.forward exactly).
# ----------------------------------------------------------------------------
def _rnn_step_kernel(c_ref, w1T_ref, b1_ref, w2T_ref, b2_ref,
                     out_ref, hnew_ref):
    """One fused i2h matmul + tanh + h2o matmul, all tiles resident in VMEM."""
    h_new = jnp.tanh(
        jnp.dot(c_ref[...], w1T_ref[...], preferred_element_type=jnp.float32)
        + b1_ref[...])
    hnew_ref[...] = h_new
    out_ref[...] = (jnp.dot(h_new, w2T_ref[...],
                            preferred_element_type=jnp.float32)
                    + b2_ref[...])


@functools.partial(jax.jit, static_argnames=("obs_dim", "nhidden", "out_dim"))
def recognition_rnn_forward(x, h, w1T, b1, w2T, b2, *,
                            obs_dim, nhidden, out_dim):
    """x: (B, obs_dim), h: (B, nhidden). Returns (out, h_new)."""
    B = x.shape[0]
    BP = _round_up(B, 8)
    FCH, FH = w1T.shape
    FOUT = w2T.shape[1]
    f32 = jnp.float32

    # Pack [h | x] into one lane-aligned slab with a single pad op.
    comb = jnp.concatenate([h.astype(f32), x.astype(f32)], axis=1)
    comb = jnp.pad(comb, ((0, BP - B), (0, FCH - (nhidden + obs_dim))))

    cost = pl.CostEstimate(
        flops=2 * BP * FCH * FH + 2 * BP * FH * FOUT,
        transcendentals=BP * FH,
        bytes_accessed=4 * (BP * FCH + FCH * FH + FH + FH * FOUT + FOUT
                            + BP * FOUT + BP * FH))

    vmem = pl.BlockSpec(memory_space=pltpu.MemorySpace.VMEM)
    out_p, hnew_p = pl.pallas_call(
        _rnn_step_kernel,
        out_shape=(jax.ShapeDtypeStruct((BP, FOUT), f32),
                   jax.ShapeDtypeStruct((BP, FH), f32)),
        in_specs=[vmem] * 5,
        out_specs=(vmem, vmem),
        cost_estimate=cost,
    )(comb, w1T, b1, w2T, b2)

    return out_p[:B, :out_dim], hnew_p[:B, :nhidden]


# ----------------------------------------------------------------------------
# Fused-sequence kernel: one pallas_call for T steps.
# Weights stay resident in VMEM (constant index_map); h is carried on-chip in
# the resident second output block; x_t blocks are streamed/pipelined.
# ----------------------------------------------------------------------------
def _rnn_seq_kernel(x_ref, h0_ref, w1T_ref, b1_ref, w2T_ref, b2_ref,
                    out_ref, h_ref):
    t = pl.program_id(0)

    @pl.when(t == 0)
    def _():
        h_ref[...] = h0_ref[...]

    # x occupies lanes [nhidden:nhidden+obs_dim], h occupies [0:nhidden]
    # (disjoint), so a single add builds the packed [h | x] slab.
    combined = x_ref[...] + h_ref[...]
    h_new = jnp.tanh(
        jnp.dot(combined, w1T_ref[...], preferred_element_type=jnp.float32)
        + b1_ref[...])
    h_ref[...] = h_new                      # carried hidden state (resident)
    out_ref[...] = (jnp.dot(h_new, w2T_ref[...],
                            preferred_element_type=jnp.float32)
                    + b2_ref[...])


@functools.partial(jax.jit, static_argnames=("obs_dim", "nhidden", "out_dim"))
def recognition_rnn_sequence(xs, h0, w1T, b1, w2T, b2, *,
                             obs_dim, nhidden, out_dim):
    """xs: (T, B, obs_dim), h0: (B, nhidden). Returns (outs (T,B,out), h_T)."""
    T, B, _ = xs.shape
    BP = _round_up(B, 8)
    FCH, FH = w1T.shape
    FOUT = w2T.shape[1]
    f32 = jnp.float32
    # Packed-slab carry requires the hidden slab and combined slab to share a
    # lane width (true here: 25 and 28 both round to 128).
    assert FCH == FH, "obs_dim + nhidden must round to the same lane width as nhidden"

    # Place x_t into lanes [nhidden:nhidden+obs_dim] of a (BP, FCH) slab.
    xs_slab = jnp.pad(xs.astype(f32),
                      ((0, 0), (0, BP - B),
                       (nhidden, FCH - nhidden - obs_dim)))
    h0_slab = jnp.pad(h0.astype(f32), ((0, BP - B), (0, FCH - nhidden)))

    cost = pl.CostEstimate(
        flops=T * (2 * BP * FCH * FH + 2 * BP * FH * FOUT),
        transcendentals=T * BP * FH,
        bytes_accessed=4 * (T * BP * FCH + BP * FCH + FCH * FH + FH
                            + FH * FOUT + FOUT + T * BP * FOUT + BP * FCH))

    out_p, h_p = pl.pallas_call(
        _rnn_seq_kernel,
        out_shape=(jax.ShapeDtypeStruct((T, BP, FOUT), f32),
                   jax.ShapeDtypeStruct((BP, FCH), f32)),
        grid=(T,),
        in_specs=[
            pl.BlockSpec((None, BP, FCH), lambda t: (t, 0, 0)),   # x_t streamed
            pl.BlockSpec((BP, FCH), lambda t: (0, 0)),            # h0 resident
            pl.BlockSpec((FCH, FH), lambda t: (0, 0)),            # weights resident
            pl.BlockSpec((1, FH), lambda t: (0, 0)),
            pl.BlockSpec((FH, FOUT), lambda t: (0, 0)),
            pl.BlockSpec((1, FOUT), lambda t: (0, 0)),
        ],
        out_specs=(
            pl.BlockSpec((None, BP, FOUT), lambda t: (t, 0, 0)),  # out_t streamed
            pl.BlockSpec((BP, FCH), lambda t: (0, 0)),            # carried h
        ),
        compiler_params=pltpu.CompilerParams(
            dimension_semantics=("arbitrary",)),
        cost_estimate=cost,
    )(xs_slab, h0_slab, w1T, b1, w2T, b2)

    return out_p[:, :B, :out_dim], h_p[:B, :nhidden]


# ----------------------------------------------------------------------------
# Parameter init (PyTorch nn.Linear-style) and pure-JAX references.
# ----------------------------------------------------------------------------
def init_params(key, latent_dim=4, obs_dim=3, nhidden=25):
    k1, k2, k3, k4 = jax.random.split(key, 4)
    fan1 = obs_dim + nhidden
    fan2 = nhidden
    b1lim = 1.0 / jnp.sqrt(fan1)
    b2lim = 1.0 / jnp.sqrt(fan2)
    i2h_w = jax.random.uniform(k1, (nhidden, fan1), jnp.float32, -b1lim, b1lim)
    i2h_b = jax.random.uniform(k2, (nhidden,), jnp.float32, -b1lim, b1lim)
    h2o_w = jax.random.uniform(k3, (latent_dim * 2, nhidden), jnp.float32,
                               -b2lim, b2lim)
    h2o_b = jax.random.uniform(k4, (latent_dim * 2,), jnp.float32, -b2lim, b2lim)
    return i2h_w, i2h_b, h2o_w, h2o_b


def _reference(x, h, i2h_w, i2h_b, h2o_w, h2o_b):
    combined = jnp.concatenate([x, h], axis=1)
    h_new = jnp.tanh(combined @ i2h_w.T + i2h_b)
    out = h_new @ h2o_w.T + h2o_b
    return out, h_new


def _reference_seq(xs, h0, i2h_w, i2h_b, h2o_w, h2o_b):
    def step(h, x):
        out, h_new = _reference(x, h, i2h_w, i2h_b, h2o_w, h2o_b)
        return h_new, out
    h_final, outs = jax.lax.scan(step, h0, xs)
    return outs, h_final


if __name__ == "__main__":
    latent_dim, obs_dim, nhidden, batch, seq_len = 4, 3, 25, 2, 8
    out_dim = latent_dim * 2

    key = jax.random.PRNGKey(0)
    kp, kx, kh, ks = jax.random.split(key, 4)
    i2h_w, i2h_b, h2o_w, h2o_b = init_params(kp, latent_dim, obs_dim, nhidden)

    # Hoisted, one-time weight packing/padding.
    w1T, b1, w2T, b2 = prepare_params(i2h_w, i2h_b, h2o_w, h2o_b, obs_dim)

    # --- single step (matches nn.Module.forward) ---
    x = jax.random.normal(kx, (batch, obs_dim), jnp.float32)
    h = jax.random.normal(kh, (batch, nhidden), jnp.float32)
    out, h_new = recognition_rnn_forward(
        x, h, w1T, b1, w2T, b2,
        obs_dim=obs_dim, nhidden=nhidden, out_dim=out_dim)
    out = jax.block_until_ready(out)
    h_new = jax.block_until_ready(h_new)

    out_ref, h_ref = _reference(x, h, i2h_w, i2h_b, h2o_w, h2o_b)
    assert out.shape == (batch, out_dim)
    assert h_new.shape == (batch, nhidden)
    assert jnp.allclose(out, out_ref, atol=1e-5, rtol=1e-5)
    assert jnp.allclose(h_new, h_ref, atol=1e-5, rtol=1e-5)

    # --- fused sequence (time loop inside the kernel, weights resident) ---
    xs = jax.random.normal(ks, (seq_len, batch, obs_dim), jnp.float32)
    h0 = jnp.zeros((batch, nhidden), jnp.float32)
    outs, h_last = recognition_rnn_sequence(
        xs, h0, w1T, b1, w2T, b2,
        obs_dim=obs_dim, nhidden=nhidden, out_dim=out_dim)
    outs = jax.block_until_ready(outs)
    h_last = jax.block_until_ready(h_last)

    outs_ref, h_last_ref = _reference_seq(xs, h0, i2h_w, i2h_b, h2o_w, h2o_b)
    assert outs.shape == (seq_len, batch, out_dim)
    assert h_last.shape == (batch, nhidden)
    assert jnp.allclose(outs, outs_ref, atol=1e-4, rtol=1e-4)
    assert jnp.allclose(h_last, h_last_ref, atol=1e-4, rtol=1e-4)

    print("KERNEL_OK")
</pallas_src>

<mosaic_0001>
module attributes {stable_mosaic.version = 11 : i64} {
  func.func @_rnn_step_kernel(%arg0: memref<8x128xf32, #tpu.memory_space<vmem>>, %arg1: memref<128x128xf32, #tpu.memory_space<vmem>>, %arg2: memref<1x128xf32, #tpu.memory_space<vmem>>, %arg3: memref<128x128xf32, #tpu.memory_space<vmem>>, %arg4: memref<1x128xf32, #tpu.memory_space<vmem>>, %arg5: memref<8x128xf32, #tpu.memory_space<vmem>>, %arg6: memref<8x128xf32, #tpu.memory_space<vmem>>) attributes {dimension_semantics = [], scalar_prefetch = 0 : i64, scratch_operands = 0 : i64, tpu.core_type = #tpu.core_type<tc>} {
    %c0 = arith.constant 0 : index
    %c0_0 = arith.constant 0 : index
    %0 = vector.load %arg0[%c0, %c0_0] : memref<8x128xf32, #tpu.memory_space<vmem>>, vector<8x128xf32>
    %c0_1 = arith.constant 0 : index
    %c0_2 = arith.constant 0 : index
    %1 = vector.load %arg1[%c0_1, %c0_2] : memref<128x128xf32, #tpu.memory_space<vmem>>, vector<128x128xf32>
    %cst = arith.constant dense<0.000000e+00> : vector<8x128xf32>
    %2 = tpu.matmul %0, %1, %cst {dimension_numbers = #tpu.dot_dimension_numbers<[1], [0], [0], [1], [0, 0, 1, 1], [], []>} : vector<8x128xf32>, vector<128x128xf32>, vector<8x128xf32> -> vector<8x128xf32>
    %c0_3 = arith.constant 0 : index
    %c0_4 = arith.constant 0 : index
    %3 = vector.load %arg2[%c0_3, %c0_4] : memref<1x128xf32, #tpu.memory_space<vmem>>, vector<1x128xf32>
    %4 = vector.broadcast %3 : vector<1x128xf32> to vector<8x128xf32>
    %5 = arith.addf %2, %4 : vector<8x128xf32>
    %6 = math.tanh %5 : vector<8x128xf32>
    %c0_5 = arith.constant 0 : index
    %c0_6 = arith.constant 0 : index
    %7 = vector.load %arg6[%c0_5, %c0_6] : memref<8x128xf32, #tpu.memory_space<vmem>>, vector<8x128xf32>
    tpu.vector_store %arg6[%c0_5, %c0_6], %6 {strides = array<i32>} : memref<8x128xf32, #tpu.memory_space<vmem>>, vector<8x128xf32>,
    %c0_7 = arith.constant 0 : index
    %c0_8 = arith.constant 0 : index
    %8 = vector.load %arg3[%c0_7, %c0_8] : memref<128x128xf32, #tpu.memory_space<vmem>>, vector<128x128xf32>
    %cst_9 = arith.constant dense<0.000000e+00> : vector<8x128xf32>
    %9 = tpu.matmul %6, %8, %cst_9 {dimension_numbers = #tpu.dot_dimension_numbers<[1], [0], [0], [1], [0, 0, 1, 1], [], []>} : vector<8x128xf32>, vector<128x128xf32>, vector<8x128xf32> -> vector<8x128xf32>
    %c0_10 = arith.constant 0 : index
    %c0_11 = arith.constant 0 : index
    %10 = vector.load %arg4[%c0_10, %c0_11] : memref<1x128xf32, #tpu.memory_space<vmem>>, vector<1x128xf32>
    %11 = vector.broadcast %10 : vector<1x128xf32> to vector<8x128xf32>
    %12 = arith.addf %9, %11 : vector<8x128xf32>
    %c0_12 = arith.constant 0 : index
    %c0_13 = arith.constant 0 : index
    %13 = vector.load %arg5[%c0_12, %c0_13] : memref<8x128xf32, #tpu.memory_space<vmem>>, vector<8x128xf32>
    tpu.vector_store %arg5[%c0_12, %c0_13], %12 {strides = array<i32>} : memref<8x128xf32, #tpu.memory_space<vmem>>, vector<8x128xf32>,
    return
  }
}

</mosaic_0001>

<llo_original>
// kernel: recognition_rnn_forward.1
$region0: #{recognition_rnn_forward.1}
  #allocation0 [shape = 'u32[]', space=smem, size = 0x4, offset = 0x4, fixed_abs, tag = 'smem constant byte address 0x4 - core index']
  #allocation1 [shape = 'u32[144,128]{1,0:T(1,128)}', space=vmem, size = 0x12000, scoped, tag = 'internal scratch']
  %s0 = inlined_call_operand.vmem [shape: f32[8,128], index: 0, kind: input, shape index: {}]
  %s1 = inlined_call_operand.hbm [shape: f32[128,128], index: 1, kind: input, shape index: {}]
  %s2 = inlined_call_operand.vmem [shape: f32[1,128], index: 2, kind: input, shape index: {}]
  %s3 = inlined_call_operand.hbm [shape: f32[128,128], index: 3, kind: input, shape index: {}]
  %s4 = inlined_call_operand.vmem [shape: f32[1,128], index: 4, kind: input, shape index: {}]
  %s5 = inlined_call_operand.vmem [shape: f32[8,128], index: 5, kind: output, shape index: {0}]
  %s6 = inlined_call_operand.vmem [shape: f32[8,128], index: 6, kind: output, shape index: {1}]
  %7 = xla_tuple %s5, %s6
  %s8 = sld [smem:[#allocation0]]
  $region46: #{recognition_rnn_forward.1} parent=0
    _
  %s10 = ssub.s32 1, %s8
  %s11 = scalar_select 0, %s10, %s8
  $region1: #{recognition_rnn_forward.1} parent=0
    #allocation2 [shape = 'u8[65536]{0}', space=vmem, size = 0x10000, scoped, tag = 'input window, operand 1, single buffered']
    #allocation3 [shape = 's32[1]{0}', space=sflag, size = 0x4, scoped, tag = 'scoped memory for recognition_rnn_forward.1']
    #allocation4 [shape = 'u8[65536]{0}', space=vmem, size = 0x10000, scoped, tag = 'input window, operand 3, single buffered']
    #allocation5 [shape = 's32[1]{0}', space=sflag, size = 0x4, scoped, tag = 'scoped memory for recognition_rnn_forward.1']
    %12 = vsyncpa [#allocation3], 0
    %13 = vsyncpa [#allocation5], 0
    // Predicated region
    $region2: #{recognition_rnn_forward.1} parent=1 // pred_check
      _
    $region3: #{recognition_rnn_forward.1} parent=1 // pred_check_branch
      %15 = sbr.rel (0) target = $region5
    $region4: #{recognition_rnn_forward.1} parent=1 // pred_region
      _
    $region5: #{recognition_rnn_forward.1} parent=1 // pred_fallthru
      _
    // Predicated region
    $region6: #{recognition_rnn_forward.1} parent=1 // pred_check
      _
    $region7: #{recognition_rnn_forward.1} parent=1 // pred_check_branch
      %17 = sbr.rel (0) target = $region9
    $region8: #{recognition_rnn_forward.1} parent=1 // pred_region
      %s19 = ssub.s32 2048, 2048
      %20 = vsyncadd [#allocation3], %s19
      %s21 = sshll.u32 [#allocation2], 4
      %s22 = int_to_ptr.vmem [resolvable:$true] %s21
      %27 = dma.hbm_to_vmem [thread:$0]  %s1, 2048, %s22, [#allocation3], 128, 128, 8
    $region9: #{recognition_rnn_forward.1} parent=1 // pred_fallthru
      _
    // Predicated region
    $region10: #{recognition_rnn_forward.1} parent=1 // pred_check
      _
    $region11: #{recognition_rnn_forward.1} parent=1 // pred_check_branch
      %29 = sbr.rel (0) target = $region13
    $region12: #{recognition_rnn_forward.1} parent=1 // pred_region
      _
    $region13: #{recognition_rnn_forward.1} parent=1 // pred_fallthru
      _
    // Predicated region
    $region14: #{recognition_rnn_forward.1} parent=1 // pred_check
      _
    $region15: #{recognition_rnn_forward.1} parent=1 // pred_check_branch
      %31 = sbr.rel (0) target = $region17
    $region16: #{recognition_rnn_forward.1} parent=1 // pred_region
      %s33 = ssub.s32 2048, 2048
      %34 = vsyncadd [#allocation5], %s33
      %s35 = sshll.u32 [#allocation4], 4
      %s36 = int_to_ptr.vmem [resolvable:$true] %s35
      %41 = dma.hbm_to_vmem [thread:$0]  %s3, 2048, %s36, [#allocation5], 128, 128, 8
    $region17: #{recognition_rnn_forward.1} parent=1 // pred_fallthru
      _
    // Predicated region
    $region18: #{recognition_rnn_forward.1} parent=1 // pred_check
      _
    $region19: #{recognition_rnn_forward.1} parent=1 // pred_check_branch
      %43 = sbr.rel (0) target = $region21
    $region20: #{recognition_rnn_forward.1} parent=1 // pred_region
      _
    $region21: #{recognition_rnn_forward.1} parent=1 // pred_fallthru
      _
    // Predicated region
    $region22: #{recognition_rnn_forward.1} parent=1 // pred_check
      _
    $region23: #{recognition_rnn_forward.1} parent=1 // pred_check_branch
      %45 = sbr.rel (0) target = $region25
    $region24: #{recognition_rnn_forward.1} parent=1 // pred_region
      %46 = dma.done [#allocation3], 2048
    $region25: #{recognition_rnn_forward.1} parent=1 // pred_fallthru
      _
    // Predicated region
    $region26: #{recognition_rnn_forward.1} parent=1 // pred_check
      _
    $region27: #{recognition_rnn_forward.1} parent=1 // pred_check_branch
      %48 = sbr.rel (0) target = $region29
    $region28: #{recognition_rnn_forward.1} parent=1 // pred_region
      %49 = dma.done [#allocation5], 2048
    $region29: #{recognition_rnn_forward.1} parent=1 // pred_fallthru
      _
    %v50 = vld [vmem:[%s0] sm:$0xff]
    %v51 = vld [vmem:[#allocation2] sm:$0xff]
    %v52 = vld [vmem:[#allocation2 + $0x8] sm:$0xff]
    %v53 = vld [vmem:[#allocation2 + $0x10] sm:$0xff]
    %v54 = vld [vmem:[#allocation2 + $0x18] sm:$0xff]
    %v55 = vld [vmem:[#allocation2 + $0x20] sm:$0xff]
    %v56 = vld [vmem:[#allocation2 + $0x28] sm:$0xff]
    %v57 = vld [vmem:[#allocation2 + $0x30] sm:$0xff]
    %v58 = vld [vmem:[#allocation2 + $0x38] sm:$0xff]
    %v59 = vld [vmem:[#allocation2 + $0x40] sm:$0xff]
    %v60 = vld [vmem:[#allocation2 + $0x48] sm:$0xff]
    %v61 = vld [vmem:[#allocation2 + $0x50] sm:$0xff]
    %v62 = vld [vmem:[#allocation2 + $0x58] sm:$0xff]
    %v63 = vld [vmem:[#allocation2 + $0x60] sm:$0xff]
    %v64 = vld [vmem:[#allocation2 + $0x68] sm:$0xff]
    %v65 = vld [vmem:[#allocation2 + $0x70] sm:$0xff]
    %v66 = vld [vmem:[#allocation2 + $0x78] sm:$0xff]
    %v67 = vld [vmem:[%s2] sm:$0x1]
    %v69 = vlaneseq
    %v70 = vshrl.u32 %v69, 7
    %v71 = vsub.s32 0, %v70
    %v72 = vrot.slane %v67, %v71
    %74 = vmatprep.subr.mxu0 0.0
    %75 = vmatpush1.msra.mxu0 %v51
    %76 = vmatprep.subr.mxu0 0.0
    %77 = vmatpush1.msra.mxu0 %v52
    %78 = vmatprep.subr.mxu0 0.0
    %79 = vmatpush1.msra.mxu0 %v53
    %80 = vmatprep.subr.mxu0 0.0
    %81 = vmatpush1.msra.mxu0 %v54
    %82 = vmatprep.subr.mxu0 0.0
    %83 = vmatpush1.msra.mxu0 %v55
    %84 = vmatprep.subr.mxu0 0.0
    %85 = vmatpush1.msra.mxu0 %v56
    %86 = vmatprep.subr.mxu0 0.0
    %87 = vmatpush1.msra.mxu0 %v57
    %88 = vmatprep.subr.mxu0 0.0
    %89 = vmatpush1.msra.mxu0 %v58
    %90 = vmatprep.subr.mxu0 0.0
    %91 = vmatpush1.msra.mxu0 %v59
    %92 = vmatprep.subr.mxu0 0.0
    %93 = vmatpush1.msra.mxu0 %v60
    %94 = vmatprep.subr.mxu0 0.0
    %95 = vmatpush1.msra.mxu0 %v61
    %96 = vmatprep.subr.mxu0 0.0
    %97 = vmatpush1.msra.mxu0 %v62
    %98 = vmatprep.subr.mxu0 0.0
    %99 = vmatpush1.msra.mxu0 %v63
    %100 = vmatprep.subr.mxu0 0.0
    %101 = vmatpush1.msra.mxu0 %v64
    %102 = vmatprep.subr.mxu0 0.0
    %103 = vmatpush1.msra.mxu0 %v65
    %104 = vmatprep.subr.mxu0 0.0
    %105 = vmatpush1.msra.mxu0 %v66
    %106 = vmatprep.subr.mxu0 0.0
    %107 = vmatpush1.msra.mxu0 0.0
    %108 = vmatprep.subr.mxu0 0.0
    %109 = vmatpush1.msra.mxu0 0.0
    %110 = vmatprep.subr.mxu0 0.0
    %111 = vmatpush1.msra.mxu0 0.0
    %112 = vmatprep.subr.mxu0 0.0
    %113 = vmatpush1.msra.mxu0 0.0
    %114 = vmatprep.subr.mxu0 0.0
    %115 = vmatpush1.msra.mxu0 0.0
    %116 = vmatprep.subr.mxu0 0.0
    %117 = vmatpush1.msra.mxu0 0.0
    %118 = vmatprep.subr.mxu0 0.0
    %119 = vmatpush1.msra.mxu0 0.0
    %120 = vmatprep.subr.mxu0 0.0
    %121 = vmatpush1.msra.mxu0 0.0
    %122 = vmatprep.subr.mxu0 0.0
    %123 = vmatpush1.msra.mxu0 0.0
    %124 = vmatprep.subr.mxu0 0.0
    %125 = vmatpush1.msra.mxu0 0.0
    %126 = vmatprep.subr.mxu0 0.0
    %127 = vmatpush1.msra.mxu0 0.0
    %128 = vmatprep.subr.mxu0 0.0
    %129 = vmatpush1.msra.mxu0 0.0
    %130 = vmatprep.subr.mxu0 0.0
    %131 = vmatpush1.msra.mxu0 0.0
    %132 = vmatprep.subr.mxu0 0.0
    %133 = vmatpush1.msra.mxu0 0.0
    %134 = vmatprep.subr.mxu0 0.0
    %135 = vmatpush1.msra.mxu0 0.0
    %136 = vmatprep.subr.mxu0 0.0
    %137 = vmatpush1.msra.mxu0 0.0
    %138 = vmatprep.mubr.f32.mxu0 0.0
    %139 = vmatmul.mubr.f32.gmra.mrb[0].mxu0 %v50
    %v140 = vpop.f32.mrb[0].mxu0
    %v141 = vadd.f32 %v72, %v140
    %v142 = vpop.f32.mrb[0].mxu0
    %143 = vdwg.mxu0
    %v144 = vtanh.pop %v141
    %145 = vst [vmem:[%s6] sm:$0xff] %v144
    %v146 = vld [vmem:[#allocation4] sm:$0xff]
    %v147 = vld [vmem:[#allocation4 + $0x8] sm:$0xff]
    %v148 = vld [vmem:[#allocation4 + $0x10] sm:$0xff]
    %v149 = vld [vmem:[#allocation4 + $0x18] sm:$0xff]
    %v150 = vld [vmem:[#allocation4 + $0x20] sm:$0xff]
    %v151 = vld [vmem:[#allocation4 + $0x28] sm:$0xff]
    %v152 = vld [vmem:[#allocation4 + $0x30] sm:$0xff]
    %v153 = vld [vmem:[#allocation4 + $0x38] sm:$0xff]
    %v154 = vld [vmem:[#allocation4 + $0x40] sm:$0xff]
    %v155 = vld [vmem:[#allocation4 + $0x48] sm:$0xff]
    %v156 = vld [vmem:[#allocation4 + $0x50] sm:$0xff]
    %v157 = vld [vmem:[#allocation4 + $0x58] sm:$0xff]
    %v158 = vld [vmem:[#allocation4 + $0x60] sm:$0xff]
    %v159 = vld [vmem:[#allocation4 + $0x68] sm:$0xff]
    %v160 = vld [vmem:[#allocation4 + $0x70] sm:$0xff]
    %v161 = vld [vmem:[#allocation4 + $0x78] sm:$0xff]
    %v162 = vld [vmem:[%s4] sm:$0x1]
    %v164 = vlaneseq
    %v165 = vshrl.u32 %v164, 7
    %v166 = vsub.s32 0, %v165
    %v167 = vrot.slane %v162, %v166
    %169 = vmatprep.subr.mxu0 0.0
    %170 = vmatpush1.msra.mxu0 %v146
    %171 = vmatprep.subr.mxu0 0.0
    %172 = vmatpush1.msra.mxu0 %v147
    %173 = vmatprep.subr.mxu0 0.0
    %174 = vmatpush1.msra.mxu0 %v148
    %175 = vmatprep.subr.mxu0 0.0
    %176 = vmatpush1.msra.mxu0 %v149
    %177 = vmatprep.subr.mxu0 0.0
    %178 = vmatpush1.msra.mxu0 %v150
    %179 = vmatprep.subr.mxu0 0.0
    %180 = vmatpush1.msra.mxu0 %v151
    %181 = vmatprep.subr.mxu0 0.0
    %182 = vmatpush1.msra.mxu0 %v152
    %183 = vmatprep.subr.mxu0 0.0
    %184 = vmatpush1.msra.mxu0 %v153
    %185 = vmatprep.subr.mxu0 0.0
    %186 = vmatpush1.msra.mxu0 %v154
    %187 = vmatprep.subr.mxu0 0.0
    %188 = vmatpush1.msra.mxu0 %v155
    %189 = vmatprep.subr.mxu0 0.0
    %190 = vmatpush1.msra.mxu0 %v156
    %191 = vmatprep.subr.mxu0 0.0
    %192 = vmatpush1.msra.mxu0 %v157
    %193 = vmatprep.subr.mxu0 0.0
    %194 = vmatpush1.msra.mxu0 %v158
    %195 = vmatprep.subr.mxu0 0.0
    %196 = vmatpush1.msra.mxu0 %v159
    %197 = vmatprep.subr.mxu0 0.0
    %198 = vmatpush1.msra.mxu0 %v160
    %199 = vmatprep.subr.mxu0 0.0
    %200 = vmatpush1.msra.mxu0 %v161
    %201 = vmatprep.subr.mxu0 0.0
    %202 = vmatpush1.msra.mxu0 0.0
    %203 = vmatprep.subr.mxu0 0.0
    %204 = vmatpush1.msra.mxu0 0.0
    %205 = vmatprep.subr.mxu0 0.0
    %206 = vmatpush1.msra.mxu0 0.0
    %207 = vmatprep.subr.mxu0 0.0
    %208 = vmatpush1.msra.mxu0 0.0
    %209 = vmatprep.subr.mxu0 0.0
    %210 = vmatpush1.msra.mxu0 0.0
    %211 = vmatprep.subr.mxu0 0.0
    %212 = vmatpush1.msra.mxu0 0.0
    %213 = vmatprep.subr.mxu0 0.0
    %214 = vmatpush1.msra.mxu0 0.0
    %215 = vmatprep.subr.mxu0 0.0
    %216 = vmatpush1.msra.mxu0 0.0
    %217 = vmatprep.subr.mxu0 0.0
    %218 = vmatpush1.msra.mxu0 0.0
    %219 = vmatprep.subr.mxu0 0.0
    %220 = vmatpush1.msra.mxu0 0.0
    %221 = vmatprep.subr.mxu0 0.0
    %222 = vmatpush1.msra.mxu0 0.0
    %223 = vmatprep.subr.mxu0 0.0
    %224 = vmatpush1.msra.mxu0 0.0
    %225 = vmatprep.subr.mxu0 0.0
    %226 = vmatpush1.msra.mxu0 0.0
    %227 = vmatprep.subr.mxu0 0.0
    %228 = vmatpush1.msra.mxu0 0.0
    %229 = vmatprep.subr.mxu0 0.0
    %230 = vmatpush1.msra.mxu0 0.0
    %231 = vmatprep.subr.mxu0 0.0
    %232 = vmatpush1.msra.mxu0 0.0
    %233 = vmatprep.mubr.f32.mxu0 0.0
    %234 = vmatmul.mubr.f32.gmra.mrb[0].mxu0 %v144
    %v235 = vpop.f32.mrb[0].mxu0
    %v236 = vadd.f32 %v167, %v235
    %v237 = vpop.f32.mrb[0].mxu0
    %238 = vdwg.mxu0
    %239 = vst [vmem:[%s5] sm:$0xff] %v236
    // Predicated region
    $region30: #{recognition_rnn_forward.1} parent=1 // pred_check
      _
    $region31: #{recognition_rnn_forward.1} parent=1 // pred_check_branch
      %241 = sbr.rel (0) target = $region33
    $region32: #{recognition_rnn_forward.1} parent=1 // pred_region
      _
    $region33: #{recognition_rnn_forward.1} parent=1 // pred_fallthru
      _
    // Predicated region
    $region34: #{recognition_rnn_forward.1} parent=1 // pred_check
      _
    $region35: #{recognition_rnn_forward.1} parent=1 // pred_check_branch
      %243 = sbr.rel (0) target = $region37
    $region36: #{recognition_rnn_forward.1} parent=1 // pred_region
      _
    $region37: #{recognition_rnn_forward.1} parent=1 // pred_fallthru
      _
    // Predicated region
    $region38: #{recognition_rnn_forward.1} parent=1 // pred_check
      _
    $region39: #{recognition_rnn_forward.1} parent=1 // pred_check_branch
      %245 = sbr.rel (0) target = $region41
    $region40: #{recognition_rnn_forward.1} parent=1 // pred_region
      _
    $region41: #{recognition_rnn_forward.1} parent=1 // pred_fallthru
      _
    // Predicated region
    $region42: #{recognition_rnn_forward.1} parent=1 // pred_check
      _
    $region43: #{recognition_rnn_forward.1} parent=1 // pred_check_branch
      %247 = sbr.rel (0) target = $region45
    $region44: #{recognition_rnn_forward.1} parent=1 // pred_region
      _
    $region45: #{recognition_rnn_forward.1} parent=1 // pred_fallthru
      _
    %248 = vsyncpa [#allocation3], 1
    %249 = vsyncpa [#allocation5], 1

</llo_original>
